<compile_context>
chip_gen: v7x
topology: tpu7x:2x2x1
jax: 0.10.0
libtpu: 0.0.40
codegen_flags: <defaults>
</compile_context>

<pallas_src>
import functools

import jax
import jax.numpy as jnp
from jax import lax
from jax.experimental import pallas as pl
from jax.experimental.pallas import tpu as pltpu

_LANE = 128
_SUBLANE = 8
_REDUCE_BLOCK_ROWS = 4096   # (4096,128) f32 tile = 2 MiB  (4 MiB double-buffered)
_FILL_BLOCK_ROWS = 8192     # (8192,128) f32 tile = 4 MiB  (output-only stream)
_MIN_PALLAS_ROWS = 256      # below this (<128 KiB f32), use the pure-XLA fast path


def _neg_limit(dtype):
    """Identity element of max() for `dtype` (usable as a mask fill value)."""
    if jnp.issubdtype(dtype, jnp.floating):
        return float("-inf")
    return int(jnp.iinfo(dtype).min)


def _max_reduce_kernel(x_ref, o_ref, acc_ref, *, rows, block_rows, num_tiles,
                       tiles_per_split, group):
    """Per-split running elementwise max into a tiny (group,128) accumulator."""
    c = pl.program_id(0)  # reduction split (sharded across TCs on megacore parts)
    i = pl.program_id(1)  # tile index within the split (sequential)
    neg = _neg_limit(acc_ref.dtype)

    @pl.when(i == 0)
    def _():
        acc_ref[...] = jnp.full(acc_ref.shape, neg, dtype=acc_ref.dtype)

    x = x_ref[...]

    def _update(xb):
        # (block_rows,128) -> (block_rows//group, group, 128): the max over
        # axis 0 is a pure elementwise (VPU) tree over native register tiles,
        # then one elementwise max into the tiny accumulator.
        blk_max = jnp.max(xb.reshape(-1, group, _LANE), axis=0)
        acc_ref[...] = jnp.maximum(acc_ref[...], blk_max)

    if rows % block_rows != 0:
        # Only the last block can be partial; gate the mask so steady-state
        # tiles stay at pure load+max.  NOTE: the index_map clamps duplicate
        # the last block when num_tiles is odd -- this is correct only
        # because max is idempotent (a sum-style reduction would break).
        blk = jnp.minimum(c * tiles_per_split + i, num_tiles - 1)
        is_partial = blk == num_tiles - 1

        @pl.when(is_partial)
        def _():
            row_ids = blk * block_rows + lax.broadcasted_iota(
                jnp.int32, x.shape, 0)
            _update(jnp.where(row_ids < rows, x, neg))

        @pl.when(jnp.logical_not(is_partial))
        def _():
            _update(x)
    else:
        _update(x)

    @pl.when(i == pl.num_programs(1) - 1)
    def _():
        # Single cross-lane/sublane reduce of (group,128) -> scalar partial.
        o_ref[0, 0] = jnp.max(acc_ref[...]).astype(o_ref.dtype)


def _fill_kernel(m_ref, o_ref, *, nsplit):
    """Broadcast the global max (max of per-split partials) into the output tile."""
    m = m_ref[0, 0]
    for s in range(1, nsplit):
        m = jnp.maximum(m, m_ref[s, 0])
    o_ref[...] = jnp.full(o_ref.shape, m, dtype=o_ref.dtype)


def dump_generator_forward(x, case=0, *,
                           reduce_block_rows=_REDUCE_BLOCK_ROWS,
                           fill_block_rows=_FILL_BLOCK_ROWS,
                           min_pallas_rows=_MIN_PALLAS_ROWS):
    """Pallas implementation of DumpGenerator.forward.

    case == 0: returns max(x) * ones_like(x)
    else:      identity passthrough

    NOTE: `case` must be a static Python value (it selects the path at trace
    time), mirroring the PyTorch module where it is a constructor arg.
    """
    if case != 0:
        return x

    orig_shape = x.shape
    orig_dtype = jnp.dtype(x.dtype)
    n = x.size

    supported = orig_dtype in (jnp.dtype(jnp.float32),
                               jnp.dtype(jnp.bfloat16),
                               jnp.dtype(jnp.int32))
    if supported:
        # Native register-tile group height: 8 rows for 32-bit, 16 for bf16.
        group = _SUBLANE * (4 // orig_dtype.itemsize)

    if (not supported
            or n % (group * _LANE) != 0          # needs a dense [rows,128] slab
            or n // _LANE < min_pallas_rows):    # too small to amortize launches
        # Fast / fallback path: XLA's fused reduce+broadcast wins here and it
        # avoids any wrapper-side whole-array pad / cast passes over HBM.
        return (jnp.max(x) * jnp.ones_like(x)).astype(orig_dtype)

    assert reduce_block_rows % group == 0, "reduce_block_rows must be a multiple of the tile height"
    assert fill_block_rows % _SUBLANE == 0, "fill_block_rows must be a multiple of 8"

    rows = n // _LANE
    x2 = x.reshape(rows, _LANE)           # zero-cost reshape, no HBM copy

    # Reduce in the input dtype (max is exact in any dtype); keep the scalar
    # partials in a 32-bit SMEM-friendly dtype that round-trips exactly.
    acc_dtype = orig_dtype
    partial_dtype = jnp.int32 if jnp.issubdtype(orig_dtype, jnp.integer) else jnp.float32

    # ---------------- Pass 1: global max reduction ----------------
    block_rows = min(reduce_block_rows, rows)   # single block if it all fits
    num_tiles = pl.cdiv(rows, block_rows)
    nsplit = 2 if num_tiles >= 2 else 1         # 2-way split -> both TCs on v7x
    tiles_per_split = pl.cdiv(num_tiles, nsplit)

    reduce_kernel = functools.partial(
        _max_reduce_kernel,
        rows=rows,
        block_rows=block_rows,
        num_tiles=num_tiles,
        tiles_per_split=tiles_per_split,
        group=group,
    )

    partial_max = pl.pallas_call(
        reduce_kernel,
        out_shape=jax.ShapeDtypeStruct((nsplit, 1), partial_dtype),
        grid=(nsplit, tiles_per_split),
        in_specs=[
            pl.BlockSpec(
                (block_rows, _LANE),
                # Clamp duplicates the last tile when num_tiles is odd; this
                # is only correct because max is idempotent (see kernel note).
                lambda c, i: (
                    jnp.minimum(c * tiles_per_split + i, num_tiles - 1),
                    0,
                ),
            )
        ],
        out_specs=pl.BlockSpec(
            (1, 1), lambda c, i: (c, 0), memory_space=pltpu.MemorySpace.SMEM
        ),
        scratch_shapes=[pltpu.VMEM((group, _LANE), acc_dtype)],
        compiler_params=pltpu.CompilerParams(
            dimension_semantics=("parallel", "arbitrary")
        ),
    )(x2)

    # ---------------- Pass 2: broadcast-fill the output ----------------
    # Fill tiles are decoupled from reduce tiles and larger: the fill is an
    # output-only stream, so VMEM cost is just the double-buffered out tile.
    fill_rows = min(fill_block_rows, rows)
    num_fill_tiles = pl.cdiv(rows, fill_rows)
    nsplit2 = 2 if num_fill_tiles >= 2 else 1
    fill_tiles_per_split = pl.cdiv(num_fill_tiles, nsplit2)

    fill_kernel = functools.partial(_fill_kernel, nsplit=nsplit)
    out2 = pl.pallas_call(
        fill_kernel,
        out_shape=jax.ShapeDtypeStruct((rows, _LANE), orig_dtype),
        grid=(nsplit2, fill_tiles_per_split),
        in_specs=[pl.BlockSpec(memory_space=pltpu.MemorySpace.SMEM)],
        out_specs=pl.BlockSpec(
            (fill_rows, _LANE),
            # Same idempotent clamp as pass 1 (re-writes the same constant).
            lambda c, i: (
                jnp.minimum(c * fill_tiles_per_split + i, num_fill_tiles - 1),
                0,
            ),
        ),
        compiler_params=pltpu.CompilerParams(
            dimension_semantics=("parallel", "arbitrary")
        ),
    )(partial_max)

    return out2.reshape(orig_shape)


# TODO(synk): DumpGenerator.loss (torch.nn.L1Loss) is not part of forward(); not implemented.


if __name__ == "__main__":
    key = jax.random.PRNGKey(0)
    k_small, k_big, k_bf16 = jax.random.split(key, 3)

    # 1) Small input consistent with the module (fast path).
    x_small = jax.random.uniform(k_small, (2, 3, 16, 16), dtype=jnp.float32)
    out_small = jax.block_until_ready(dump_generator_forward(x_small, case=0))
    ref_small = jnp.max(x_small) * jnp.ones_like(x_small)
    assert out_small.shape == x_small.shape and out_small.dtype == x_small.dtype
    assert jnp.allclose(out_small, ref_small), "mismatch (small input)"

    # 2) Module-sized input (8, 3, 64, 64) -> Pallas path, default tiling.
    x_big = jax.random.uniform(k_big, (8, 3, 64, 64), dtype=jnp.float32)
    ref_big = jnp.max(x_big) * jnp.ones_like(x_big)
    out_big = jax.block_until_ready(dump_generator_forward(x_big, case=0))
    assert jnp.allclose(out_big, ref_big), "mismatch (default tiling)"

    # 3) Force multi-tile grid, 2-way split, masked partial boundary tiles.
    out_tiled = jax.block_until_ready(
        dump_generator_forward(x_big, case=0,
                               reduce_block_rows=80, fill_block_rows=80)
    )
    assert jnp.allclose(out_tiled, ref_big), "mismatch (small tiles / masked boundary)"

    # 4) bf16 path (accumulator stays in bf16; exact through the f32 partial).
    x_bf16 = jax.random.uniform(k_bf16, (8, 3, 64, 64)).astype(jnp.bfloat16)
    ref_bf16 = jnp.max(x_bf16) * jnp.ones_like(x_bf16)
    out_bf16 = jax.block_until_ready(dump_generator_forward(x_bf16, case=0))
    assert out_bf16.dtype == jnp.bfloat16
    assert jnp.array_equal(out_bf16, ref_bf16), "mismatch (bf16)"

    # 5) case != 0 path (identity).
    out_id = jax.block_until_ready(dump_generator_forward(x_small, case=1))
    assert jnp.array_equal(out_id, x_small)

    print("KERNEL_OK")
</pallas_src>

<mosaic_0001>
module attributes {stable_mosaic.version = 11 : i64} {
  func.func @_max_reduce_kernel(%arg0: i32, %arg1: i32, %arg2: memref<768x128xf32, #tpu.memory_space<vmem>>, %arg3: memref<1x1xf32, #tpu.memory_space<smem>>, %arg4: memref<8x128xf32, #tpu.memory_space<vmem>>) attributes {dimension_semantics = [#tpu.dimension_semantics<parallel>, #tpu.dimension_semantics<arbitrary>], iteration_bounds = array<i64: 1, 1>, scalar_prefetch = 0 : i64, scratch_operands = 1 : i64, tpu.core_type = #tpu.core_type<tc>, window_params = [{transform_indices = @transform_0, window_bounds = array<i64: 768, 128>}, {transform_indices = @transform_1, window_bounds = array<i64: 1, 1>}]} {
    %c0_i32 = arith.constant 0 : i32
    %0 = arith.cmpi eq, %arg1, %c0_i32 : i32
    %1 = arith.extui %0 : i1 to i32
    %c0_i32_0 = arith.constant 0 : i32
    %2 = arith.cmpi ne, %1, %c0_i32_0 : i32
    scf.if %2 {
      %cst_8 = arith.constant 0xFF800000 : f32
      %12 = vector.broadcast %cst_8 : f32 to vector<8x128xf32>
      %c0_9 = arith.constant 0 : index
      %c0_10 = arith.constant 0 : index
      %13 = vector.load %arg4[%c0_9, %c0_10] : memref<8x128xf32, #tpu.memory_space<vmem>>, vector<8x128xf32>
      tpu.vector_store %arg4[%c0_9, %c0_10], %12 {strides = array<i32>} : memref<8x128xf32, #tpu.memory_space<vmem>>, vector<8x128xf32>,
    } else {
    }
    %c0 = arith.constant 0 : index
    %c0_1 = arith.constant 0 : index
    %3 = vector.load %arg2[%c0, %c0_1] : memref<768x128xf32, #tpu.memory_space<vmem>>, vector<768x128xf32>
    %4 = vector.shape_cast %3 : vector<768x128xf32> to vector<96x8x128xf32>
    %cst = arith.constant dense<0xFF800000> : vector<8x128xf32>
    %5 = vector.multi_reduction <maximumf>, %4, %cst [0] : vector<96x8x128xf32> to vector<8x128xf32>
    %c0_2 = arith.constant 0 : index
    %c0_3 = arith.constant 0 : index
    %6 = vector.load %arg4[%c0_2, %c0_3] : memref<8x128xf32, #tpu.memory_space<vmem>>, vector<8x128xf32>
    %7 = arith.maximumf %6, %5 : vector<8x128xf32>
    %c0_4 = arith.constant 0 : index
    %c0_5 = arith.constant 0 : index
    %8 = vector.load %arg4[%c0_4, %c0_5] : memref<8x128xf32, #tpu.memory_space<vmem>>, vector<8x128xf32>
    tpu.vector_store %arg4[%c0_4, %c0_5], %7 {strides = array<i32>} : memref<8x128xf32, #tpu.memory_space<vmem>>, vector<8x128xf32>,
    %c0_i32_6 = arith.constant 0 : i32
    %9 = arith.cmpi eq, %arg1, %c0_i32_6 : i32
    %10 = arith.extui %9 : i1 to i32
    %c0_i32_7 = arith.constant 0 : i32
    %11 = arith.cmpi ne, %10, %c0_i32_7 : i32
    scf.if %11 {
      %c0_8 = arith.constant 0 : index
      %c0_9 = arith.constant 0 : index
      %12 = vector.load %arg4[%c0_8, %c0_9] : memref<8x128xf32, #tpu.memory_space<vmem>>, vector<8x128xf32>
      %13 = vector.shape_cast %12 : vector<8x128xf32> to vector<1x8x128xf32>
      %cst_10 = arith.constant dense<0xFF800000> : vector<1xf32>
      %14 = vector.multi_reduction <maximumf>, %13, %cst_10 [1, 2] : vector<1x8x128xf32> to vector<1xf32>
      %15 = vector.shape_cast %14 : vector<1xf32> to vector<1x1x1xf32>
      %16 = vector.extract %15[0, 0, 0] : f32 from vector<1x1x1xf32>
      %c0_11 = arith.constant 0 : index
      %c0_12 = arith.constant 0 : index
      %17 = memref.load %arg3[%c0_11, %c0_12] : memref<1x1xf32, #tpu.memory_space<smem>>
      memref.store %16, %arg3[%c0_11, %c0_12] : memref<1x1xf32, #tpu.memory_space<smem>>
    } else {
    }
    return
  }
  func.func @transform_0(%arg0: i32, %arg1: i32) -> (i32, i32) {
    %c1_i32 = arith.constant 1 : i32
    %0 = arith.muli %arg0, %c1_i32 : i32
    %1 = arith.addi %0, %arg1 : i32
    %c0_i32 = arith.constant 0 : i32
    %2 = arith.minsi %1, %c0_i32 : i32
    %c0_i32_0 = arith.constant 0 : i32
    %c0_i32_1 = arith.constant 0 : i32
    return %2, %c0_i32_0 : i32, i32
  }
  func.func @transform_1(%arg0: i32, %arg1: i32) -> (i32, i32) {
    %c0_i32 = arith.constant 0 : i32
    %c0_i32_0 = arith.constant 0 : i32
    return %arg0, %c0_i32 : i32, i32
  }
}

</mosaic_0001>

<llo_original>
// kernel: tpu_custom_call.1
$region0: #{tpu_custom_call.1}
  #allocation0 [shape = 'u32[]', space=smem, size = 0x4, offset = 0x4, fixed_abs, tag = 'smem constant byte address 0x4 - core index']
  #allocation1 [shape = 'u32[144,128]{1,0:T(1,128)}', space=vmem, size = 0x12000, scoped, tag = 'internal scratch']
  #allocation2 [shape = 'f32[8,128]{1,0:T(8,128)}', space=vmem, size = 0x1000, scoped, tag = 'scratch operand']
  %s0 = inlined_call_operand.hbm [shape: f32[768,128], index: 0, kind: input, shape index: {}]
  %s1 = inlined_call_operand.hbm [shape: f32[1,1], index: 1, kind: output, shape index: {}]
  %s2 = sld [smem:[#allocation0]]
  $region26: #{tpu_custom_call.1} parent=0
    _
  %s4 = ssub.s32 1, %s2
  %s5 = scalar_select 0, %s4, %s2
  $region1: #{tpu_custom_call.1} parent=0
    #allocation3 [shape = 'u8[393216]{0}', space=vmem, size = 0x60000, scoped, tag = 'input window, operand 0, single buffered']
    #allocation4 [shape = 's32[1]{0}', space=sflag, size = 0x4, scoped, tag = 'scoped memory for tpu_custom_call.1']
    #allocation5 [shape = 's32[1]{0}', space=sflag, size = 0x4, scoped, tag = 'scoped memory for tpu_custom_call.1']
    #allocation6 [shape = 'u8[512]{0}', space=smem, size = 0x200, scoped, tag = 'output window, operand 0, single buffered']
    %6 = vsyncpa [#allocation4], 0
    %7 = vsyncpa [#allocation5], 0
    // Predicated region
    $region2: #{tpu_custom_call.1} parent=1 // pred_check
      _
    $region3: #{tpu_custom_call.1} parent=1 // pred_check_branch
      %9 = sbr.rel (0) target = $region5
    $region4: #{tpu_custom_call.1} parent=1 // pred_region
      %s10 = sadd.s32 0, 0
      %p11 = scmp.lt.s32.totalorder %s10, 0
      %s12 = scalar_select %p11, %s10, 0
      %s13 = smul.u32 96, %s12
      %s15 = ssub.s32 12288, 12288
      %16 = vsyncadd [#allocation4], %s15
      %s17 = smul.addr %s13, 128
      %s18 = scalar_lea.hbm %s0, %s17
      %s19 = sshll.u32 [#allocation3], 4
      %s20 = int_to_ptr.vmem [resolvable:$true] %s19
      %25 = dma.hbm_to_vmem [thread:$0]  %s18, 12288, %s20, [#allocation4], 128, 128, 8
    $region5: #{tpu_custom_call.1} parent=1 // pred_fallthru
      _
    // Predicated region
    $region6: #{tpu_custom_call.1} parent=1 // pred_check
      _
    $region7: #{tpu_custom_call.1} parent=1 // pred_check_branch
      %27 = sbr.rel (0) target = $region9
    $region8: #{tpu_custom_call.1} parent=1 // pred_region
      %28 = dma.done [#allocation4], 12288
    $region9: #{tpu_custom_call.1} parent=1 // pred_fallthru
      _
    %s29 = sadd.s32 0, 0
    %p30 = scmp.lt.s32.totalorder %s29, 0
    %s31 = scalar_select %p30, %s29, 0
    %s32 = smul.u32 96, %s31
    %p33 = scmp.eq.s32.totalorder 0, 0
    // Predicated region
    $region10: #{tpu_custom_call.1} parent=1 // pred_check
      %p34 = pneg %p33
    $region11: #{tpu_custom_call.1} parent=1 // pred_check_branch
      %36 = sbr.rel (%p34) target = $region13
    $region12: #{tpu_custom_call.1} parent=1 // pred_region
      %37 = vst [vmem:[#allocation2] sm:$0xff] -inf
    $region13: #{tpu_custom_call.1} parent=1 // pred_fallthru
      _
    %v38 = vld [vmem:[#allocation3] sm:$0xff]
    %v39 = vld [vmem:[#allocation3 + $0x8] sm:$0xff]
    %v40 = vld [vmem:[#allocation3 + $0x10] sm:$0xff]
    %v41 = vld [vmem:[#allocation3 + $0x18] sm:$0xff]
    %v42 = vld [vmem:[#allocation3 + $0x20] sm:$0xff]
    %v43 = vld [vmem:[#allocation3 + $0x28] sm:$0xff]
    %v44 = vld [vmem:[#allocation3 + $0x30] sm:$0xff]
    %v45 = vld [vmem:[#allocation3 + $0x38] sm:$0xff]
    %v46 = vld [vmem:[#allocation3 + $0x40] sm:$0xff]
    %v47 = vld [vmem:[#allocation3 + $0x48] sm:$0xff]
    %v48 = vld [vmem:[#allocation3 + $0x50] sm:$0xff]
    %v49 = vld [vmem:[#allocation3 + $0x58] sm:$0xff]
    %v50 = vld [vmem:[#allocation3 + $0x60] sm:$0xff]
    %v51 = vld [vmem:[#allocation3 + $0x68] sm:$0xff]
    %v52 = vld [vmem:[#allocation3 + $0x70] sm:$0xff]
    %v53 = vld [vmem:[#allocation3 + $0x78] sm:$0xff]
    %v54 = vld [vmem:[#allocation3 + $0x80] sm:$0xff]
    %v55 = vld [vmem:[#allocation3 + $0x88] sm:$0xff]
    %v56 = vld [vmem:[#allocation3 + $0x90] sm:$0xff]
    %v57 = vld [vmem:[#allocation3 + $0x98] sm:$0xff]
    %v58 = vld [vmem:[#allocation3 + $0xa0] sm:$0xff]
    %v59 = vld [vmem:[#allocation3 + $0xa8] sm:$0xff]
    %v60 = vld [vmem:[#allocation3 + $0xb0] sm:$0xff]
    %v61 = vld [vmem:[#allocation3 + $0xb8] sm:$0xff]
    %v62 = vld [vmem:[#allocation3 + $0xc0] sm:$0xff]
    %v63 = vld [vmem:[#allocation3 + $0xc8] sm:$0xff]
    %v64 = vld [vmem:[#allocation3 + $0xd0] sm:$0xff]
    %v65 = vld [vmem:[#allocation3 + $0xd8] sm:$0xff]
    %v66 = vld [vmem:[#allocation3 + $0xe0] sm:$0xff]
    %v67 = vld [vmem:[#allocation3 + $0xe8] sm:$0xff]
    %v68 = vld [vmem:[#allocation3 + $0xf0] sm:$0xff]
    %v69 = vld [vmem:[#allocation3 + $0xf8] sm:$0xff]
    %v70 = vld [vmem:[#allocation3 + $0x100] sm:$0xff]
    %v71 = vld [vmem:[#allocation3 + $0x108] sm:$0xff]
    %v72 = vld [vmem:[#allocation3 + $0x110] sm:$0xff]
    %v73 = vld [vmem:[#allocation3 + $0x118] sm:$0xff]
    %v74 = vld [vmem:[#allocation3 + $0x120] sm:$0xff]
    %v75 = vld [vmem:[#allocation3 + $0x128] sm:$0xff]
    %v76 = vld [vmem:[#allocation3 + $0x130] sm:$0xff]
    %v77 = vld [vmem:[#allocation3 + $0x138] sm:$0xff]
    %v78 = vld [vmem:[#allocation3 + $0x140] sm:$0xff]
    %v79 = vld [vmem:[#allocation3 + $0x148] sm:$0xff]
    %v80 = vld [vmem:[#allocation3 + $0x150] sm:$0xff]
    %v81 = vld [vmem:[#allocation3 + $0x158] sm:$0xff]
    %v82 = vld [vmem:[#allocation3 + $0x160] sm:$0xff]
    %v83 = vld [vmem:[#allocation3 + $0x168] sm:$0xff]
    %v84 = vld [vmem:[#allocation3 + $0x170] sm:$0xff]
    %v85 = vld [vmem:[#allocation3 + $0x178] sm:$0xff]
    %v86 = vld [vmem:[#allocation3 + $0x180] sm:$0xff]
    %v87 = vld [vmem:[#allocation3 + $0x188] sm:$0xff]
    %v88 = vld [vmem:[#allocation3 + $0x190] sm:$0xff]
    %v89 = vld [vmem:[#allocation3 + $0x198] sm:$0xff]
    %v90 = vld [vmem:[#allocation3 + $0x1a0] sm:$0xff]
    %v91 = vld [vmem:[#allocation3 + $0x1a8] sm:$0xff]
    %v92 = vld [vmem:[#allocation3 + $0x1b0] sm:$0xff]
    %v93 = vld [vmem:[#allocation3 + $0x1b8] sm:$0xff]
    %v94 = vld [vmem:[#allocation3 + $0x1c0] sm:$0xff]
    %v95 = vld [vmem:[#allocation3 + $0x1c8] sm:$0xff]
    %v96 = vld [vmem:[#allocation3 + $0x1d0] sm:$0xff]
    %v97 = vld [vmem:[#allocation3 + $0x1d8] sm:$0xff]
    %v98 = vld [vmem:[#allocation3 + $0x1e0] sm:$0xff]
    %v99 = vld [vmem:[#allocation3 + $0x1e8] sm:$0xff]
    %v100 = vld [vmem:[#allocation3 + $0x1f0] sm:$0xff]
    %v101 = vld [vmem:[#allocation3 + $0x1f8] sm:$0xff]
    %v102 = vld [vmem:[#allocation3 + $0x200] sm:$0xff]
    %v103 = vld [vmem:[#allocation3 + $0x208] sm:$0xff]
    %v104 = vld [vmem:[#allocation3 + $0x210] sm:$0xff]
    %v105 = vld [vmem:[#allocation3 + $0x218] sm:$0xff]
    %v106 = vld [vmem:[#allocation3 + $0x220] sm:$0xff]
    %v107 = vld [vmem:[#allocation3 + $0x228] sm:$0xff]
    %v108 = vld [vmem:[#allocation3 + $0x230] sm:$0xff]
    %v109 = vld [vmem:[#allocation3 + $0x238] sm:$0xff]
    %v110 = vld [vmem:[#allocation3 + $0x240] sm:$0xff]
    %v111 = vld [vmem:[#allocation3 + $0x248] sm:$0xff]
    %v112 = vld [vmem:[#allocation3 + $0x250] sm:$0xff]
    %v113 = vld [vmem:[#allocation3 + $0x258] sm:$0xff]
    %v114 = vld [vmem:[#allocation3 + $0x260] sm:$0xff]
    %v115 = vld [vmem:[#allocation3 + $0x268] sm:$0xff]
    %v116 = vld [vmem:[#allocation3 + $0x270] sm:$0xff]
    %v117 = vld [vmem:[#allocation3 + $0x278] sm:$0xff]
    %v118 = vld [vmem:[#allocation3 + $0x280] sm:$0xff]
    %v119 = vld [vmem:[#allocation3 + $0x288] sm:$0xff]
    %v120 = vld [vmem:[#allocation3 + $0x290] sm:$0xff]
    %v121 = vld [vmem:[#allocation3 + $0x298] sm:$0xff]
    %v122 = vld [vmem:[#allocation3 + $0x2a0] sm:$0xff]
    %v123 = vld [vmem:[#allocation3 + $0x2a8] sm:$0xff]
    %v124 = vld [vmem:[#allocation3 + $0x2b0] sm:$0xff]
    %v125 = vld [vmem:[#allocation3 + $0x2b8] sm:$0xff]
    %v126 = vld [vmem:[#allocation3 + $0x2c0] sm:$0xff]
    %v127 = vld [vmem:[#allocation3 + $0x2c8] sm:$0xff]
    %v128 = vld [vmem:[#allocation3 + $0x2d0] sm:$0xff]
    %v129 = vld [vmem:[#allocation3 + $0x2d8] sm:$0xff]
    %v130 = vld [vmem:[#allocation3 + $0x2e0] sm:$0xff]
    %v131 = vld [vmem:[#allocation3 + $0x2e8] sm:$0xff]
    %v132 = vld [vmem:[#allocation3 + $0x2f0] sm:$0xff]
    %v133 = vld [vmem:[#allocation3 + $0x2f8] sm:$0xff]
    %v134 = vmax.f32 %v38, %v42
    %v135 = vmax.f32 %v39, %v43
    %v136 = vmax.f32 %v40, %v44
    %v137 = vmax.f32 %v41, %v45
    %v138 = vmax.f32 %v134, %v46
    %v139 = vmax.f32 %v135, %v47
    %v140 = vmax.f32 %v136, %v48
    %v141 = vmax.f32 %v137, %v49
    %v142 = vmax.f32 %v138, %v50
    %v143 = vmax.f32 %v139, %v51
    %v144 = vmax.f32 %v140, %v52
    %v145 = vmax.f32 %v141, %v53
    %v146 = vmax.f32 %v142, %v54
    %v147 = vmax.f32 %v143, %v55
    %v148 = vmax.f32 %v144, %v56
    %v149 = vmax.f32 %v145, %v57
    %v150 = vmax.f32 %v146, %v58
    %v151 = vmax.f32 %v147, %v59
    %v152 = vmax.f32 %v148, %v60
    %v153 = vmax.f32 %v149, %v61
    %v154 = vmax.f32 %v150, %v62
    %v155 = vmax.f32 %v151, %v63
    %v156 = vmax.f32 %v152, %v64
    %v157 = vmax.f32 %v153, %v65
    %v158 = vmax.f32 %v154, %v66
    %v159 = vmax.f32 %v155, %v67
    %v160 = vmax.f32 %v156, %v68
    %v161 = vmax.f32 %v157, %v69
    %v162 = vmax.f32 %v158, %v70
    %v163 = vmax.f32 %v159, %v71
    %v164 = vmax.f32 %v160, %v72
    %v165 = vmax.f32 %v161, %v73
    %v166 = vmax.f32 %v162, %v74
    %v167 = vmax.f32 %v163, %v75
    %v168 = vmax.f32 %v164, %v76
    %v169 = vmax.f32 %v165, %v77
    %v170 = vmax.f32 %v166, %v78
    %v171 = vmax.f32 %v167, %v79
    %v172 = vmax.f32 %v168, %v80
    %v173 = vmax.f32 %v169, %v81
    %v174 = vmax.f32 %v170, %v82
    %v175 = vmax.f32 %v171, %v83
    %v176 = vmax.f32 %v172, %v84
    %v177 = vmax.f32 %v173, %v85
    %v178 = vmax.f32 %v174, %v86
    %v179 = vmax.f32 %v175, %v87
    %v180 = vmax.f32 %v176, %v88
    %v181 = vmax.f32 %v177, %v89
    %v182 = vmax.f32 %v178, %v90
    %v183 = vmax.f32 %v179, %v91
    %v184 = vmax.f32 %v180, %v92
    %v185 = vmax.f32 %v181, %v93
    %v186 = vmax.f32 %v182, %v94
    %v187 = vmax.f32 %v183, %v95
    %v188 = vmax.f32 %v184, %v96
    %v189 = vmax.f32 %v185, %v97
    %v190 = vmax.f32 %v186, %v98
    %v191 = vmax.f32 %v187, %v99
    %v192 = vmax.f32 %v188, %v100
    %v193 = vmax.f32 %v189, %v101
    %v194 = vmax.f32 %v190, %v102
    %v195 = vmax.f32 %v191, %v103
    %v196 = vmax.f32 %v192, %v104
    %v197 = vmax.f32 %v193, %v105
    %v198 = vmax.f32 %v194, %v106
    %v199 = vmax.f32 %v195, %v107
    %v200 = vmax.f32 %v196, %v108
    %v201 = vmax.f32 %v197, %v109
    %v202 = vmax.f32 %v198, %v110
    %v203 = vmax.f32 %v199, %v111
    %v204 = vmax.f32 %v200, %v112
    %v205 = vmax.f32 %v201, %v113
    %v206 = vmax.f32 %v202, %v114
    %v207 = vmax.f32 %v203, %v115
    %v208 = vmax.f32 %v204, %v116
    %v209 = vmax.f32 %v205, %v117
    %v210 = vmax.f32 %v206, %v118
    %v211 = vmax.f32 %v207, %v119
    %v212 = vmax.f32 %v208, %v120
    %v213 = vmax.f32 %v209, %v121
    %v214 = vmax.f32 %v210, %v122
    %v215 = vmax.f32 %v211, %v123
    %v216 = vmax.f32 %v212, %v124
    %v217 = vmax.f32 %v213, %v125
    %v218 = vmax.f32 %v214, %v126
    %v219 = vmax.f32 %v215, %v127
    %v220 = vmax.f32 %v216, %v128
    %v221 = vmax.f32 %v217, %v129
    %v222 = vmax.f32 %v218, %v130
    %v223 = vmax.f32 %v219, %v131
    %v224 = vmax.f32 %v220, %v132
    %v225 = vmax.f32 %v221, %v133
    %v226 = vmax.f32 %v222, %v223
    %v227 = vmax.f32 %v224, %v225
    %v228 = vmax.f32 %v226, %v227
    %v229 = vld [vmem:[#allocation2] sm:$0xff]
    %v230 = vmax.f32 %v229, %v228
    %231 = vst [vmem:[#allocation2] sm:$0xff] %v230
    // Predicated region
    $region14: #{tpu_custom_call.1} parent=1 // pred_check
      %p232 = pneg %p33
    $region15: #{tpu_custom_call.1} parent=1 // pred_check_branch
      %234 = sbr.rel (%p232) target = $region17
    $region16: #{tpu_custom_call.1} parent=1 // pred_region
      %v235 = vld [vmem:[#allocation2] sm:$0xff]
      %236 = vmax.xlane.f32.xlu0 %v235
      %v237 = vpop.xlane.xlu0 %236
      %v238 = vrot.slane %v237, 4
      %v239 = vmax.f32 %v237, %v238
      %v240 = vrot.slane %v239, 2
      %v241 = vmax.f32 %v239, %v240
      %v242 = vrot.slane %v241, 1
      %v243 = vmax.f32 %v241, %v242
      %s244 = vtos %v243
      %s245 = scalar_lea.smem [#allocation6], 0
      %246 = sst [smem:[%s245]] %s244
    $region17: #{tpu_custom_call.1} parent=1 // pred_fallthru
      _
    // Predicated region
    $region18: #{tpu_custom_call.1} parent=1 // pred_check
      _
    $region19: #{tpu_custom_call.1} parent=1 // pred_check_branch
      %248 = sbr.rel (0) target = $region21
    $region20: #{tpu_custom_call.1} parent=1 // pred_region
      %s250 = ssub.s32 16, 16
      %251 = vsyncadd [#allocation5], %s250
      %254 = dma.smem_to_hbm [#allocation6], 16, %s1, [#allocation5]
    $region21: #{tpu_custom_call.1} parent=1 // pred_fallthru
      _
    // Predicated region
    $region22: #{tpu_custom_call.1} parent=1 // pred_check
      _
    $region23: #{tpu_custom_call.1} parent=1 // pred_check_branch
      %256 = sbr.rel (0) target = $region25
    $region24: #{tpu_custom_call.1} parent=1 // pred_region
      %257 = dma.done [#allocation5], 16
    $region25: #{tpu_custom_call.1} parent=1 // pred_fallthru
      _
    %258 = sfence
    %259 = vsyncpa [#allocation4], 1
    %260 = vsyncpa [#allocation5], 1

</llo_original>
